<compile_context>
chip_gen: v7x
topology: tpu7x:2x2x1
jax: 0.10.0
libtpu: 0.0.40
codegen_flags: <defaults>
</compile_context>

<pallas_src>
import functools
import math

import jax
import jax.numpy as jnp
from jax.experimental import pallas as pl
from jax.experimental.pallas import tpu as pltpu

LANES = 128  # every in-kernel activation / weight column block is kept 128-lane dense


def _round_up(x, m):
    return (x + m - 1) // m * m


# --------------------------------------------------------------------------
# Fused forward kernel (whole module, one gridless pallas_call)
#   x_ref   [N, nfeat_p]   node features (feature dim zero-padded to a multiple of 8)
#   adj_ref [N, 4N]        lane-concat [A_b1 | A_b2 | A_b3 | A_b4] of branch adjacencies
#   w_ref   [R, 128]       all weights, sublane-stacked + 128-lane zero-padded
#   b_ref   [8, 128]       all biases, one row each
#   out_ref [N, 128]       lane-dense head slab; real heads in lanes [0, 5*nclass)
# --------------------------------------------------------------------------
def _fused_forward_kernel(x_ref, adj_ref, w_ref, b_ref, out_ref, *,
                          nfeat_p, nhid2, nhid3, nhid4, nclass):
    f32 = jnp.float32
    x = x_ref[...]                       # [N, nfeat_p]
    adj_cat = adj_ref[...]               # [N, 4N]
    n = x.shape[0]

    # Hoisted lane iota + per-branch lane masks, built once per distinct branch width and
    # reused across the three GCN levels.
    lane = jax.lax.broadcasted_iota(jnp.int32, (n, LANES), 1)
    mask_cache = {}

    def branch_masks(width):
        if width not in mask_cache:
            mask_cache[width] = [
                ((lane >= b * width) & (lane < (b + 1) * width)).astype(f32)
                for b in range(4)
            ]
        return mask_cache[width]

    # Static row offsets into the packed weight slab (static ref slices are free).
    offs = {}
    row = 0
    for name, rows in (("w1", nfeat_p), ("w2", LANES), ("w3", LANES),
                       ("we1", LANES), ("we2", LANES), ("we3", LANES),
                       ("wha", LANES), ("whb", LANES)):
        offs[name] = (row, rows)
        row += rows

    def w(name):
        r0, rows = offs[name]
        return w_ref[r0:r0 + rows, :]    # [rows, 128]

    def bias(i):
        return b_ref[i:i + 1, :]         # [1, 128], broadcasts over rows

    def gcn_level(h, wname, bias_row, width, relu):
        # Support for all 4 branches in one lane-packed matmul: [N, 128].
        support = jnp.dot(h, w(wname), preferred_element_type=f32)
        # One propagation matmul for all 4 branches: stack the branch-masked supports along
        # sublanes -> [4N, 128]; block b of the contraction against the lane-concat
        # adjacency reproduces adj_b @ support[:, b*width:(b+1)*width] in branch-b lanes.
        masked = [support * m for m in branch_masks(width)]
        prop = jnp.dot(adj_cat, jnp.concatenate(masked, axis=0),
                       preferred_element_type=f32)
        out = prop + bias(bias_row)
        return jnp.maximum(out, 0.0) if relu else out

    h = gcn_level(x, "w1", 0, nhid2, True)      # relu(gc level 1); dropout(eval) = identity
    h = gcn_level(h, "w2", 1, nhid3, True)      # relu(gc level 2)
    cat = gcn_level(h, "w3", 2, nhid4, False)   # gc level 3 == lane-packed [x1|x2|x3|x4]

    # Ensemble MLP on the lane-packed concat (dropout = identity).
    e = jnp.maximum(jnp.dot(cat, w("we1"), preferred_element_type=f32) + bias(3), 0.0)
    e = jnp.maximum(jnp.dot(e, w("we2"), preferred_element_type=f32) + bias(4), 0.0)
    e = jnp.maximum(jnp.dot(e, w("we3"), preferred_element_type=f32) + bias(5), 0.0)

    # All 5 dense heads in one 128-lane-dense slab (unmasked store):
    #   lanes [b*nclass:(b+1)*nclass] = dense_{b+1}(relu(x_{b+1})); lanes [4c:5c] = dense5(e).
    out_ref[...] = (jnp.dot(jnp.maximum(cat, 0.0), w("wha"), preferred_element_type=f32)
                    + jnp.dot(e, w("whb"), preferred_element_type=f32)
                    + bias(6))


def gcn_decay_rep1_forward(packed, x, adj1, adj2, adj3, adj4, adj5):
    """Returns (x1_dense, x2_dense, x3_dense, x4_dense, x_ensemble)."""
    del adj2  # accepted but unused, mirroring the reference forward
    N = x.shape[0]
    nclass = packed["nclass"]
    nfeat_p = packed["nfeat_p"]

    if x.shape[1] != nfeat_p:                    # zero-pad feature dim to the packed width
        x = jnp.pad(x, ((0, 0), (0, nfeat_p - x.shape[1])))
    # Branch order of the reference: branch1->adj5, branch2->adj4, branch3->adj3, branch4->adj1.
    adj_cat = jnp.concatenate([adj5, adj4, adj3, adj1], axis=1)   # [N, 4N], single DMA

    # TODO(synk): for large N, cast adj_cat/x to bf16 at this boundary (halves the only
    # N^2-scaling DMA/VMEM cost) and tile the node dim over a "parallel" grid so v7x's two
    # TensorCores split the propagation; unnecessary at these shapes.

    w_slab, b_slab = packed["w"], packed["b"]
    flops = 2 * N * LANES * (nfeat_p + 3 * 4 * N + 7 * LANES)
    bytes_accessed = 4 * (int(x.size) + int(adj_cat.size) + int(w_slab.size)
                          + int(b_slab.size) + N * LANES)

    kernel = functools.partial(
        _fused_forward_kernel,
        nfeat_p=nfeat_p, nhid2=packed["nhid2"], nhid3=packed["nhid3"],
        nhid4=packed["nhid4"], nclass=nclass)

    heads = pl.pallas_call(
        kernel,
        out_shape=jax.ShapeDtypeStruct((N, LANES), jnp.float32),
        compiler_params=pltpu.CompilerParams(vmem_limit_bytes=48 * 1024 * 1024),
        cost_estimate=pl.CostEstimate(flops=int(flops), transcendentals=0,
                                      bytes_accessed=int(bytes_accessed)),
    )(x, adj_cat, w_slab, b_slab)

    # Split the lane-dense head slab into the module's 5 outputs (host glue).
    return tuple(heads[:, i * nclass:(i + 1) * nclass] for i in range(5))


# --------------------------------------------------------------------------
# Parameter construction (mirrors the torch module) + one-time packing
# --------------------------------------------------------------------------
def _gc_init(key, f_in, f_out):
    k1, k2 = jax.random.split(key)
    stdv = 1.0 / math.sqrt(f_out)
    w = jax.random.uniform(k1, (f_in, f_out), jnp.float32, -stdv, stdv)
    b = jax.random.uniform(k2, (f_out,), jnp.float32, -stdv, stdv)
    return w, b


def _lin_init(key, f_in, f_out):
    k1, k2 = jax.random.split(key)
    bound = 1.0 / math.sqrt(f_in)
    w = jax.random.uniform(k1, (f_out, f_in), jnp.float32, -bound, bound)  # torch [out, in]
    b = jax.random.uniform(k2, (f_out,), jnp.float32, -bound, bound)
    return w, b


def init_params(key, nFeat, nhid2, nhid3, nhid4, nclass):
    keys = jax.random.split(key, 32)
    ki = iter(keys)
    params = {}
    for bname in ("b1", "b2", "b3", "b4"):            # gc1..gc12
        params[bname] = [
            _gc_init(next(ki), nFeat, nhid2),
            _gc_init(next(ki), nhid2, nhid3),
            _gc_init(next(ki), nhid3, nhid4),
        ]
    for dname in ("dense1", "dense2", "dense3", "dense4", "dense5"):
        params[dname] = _lin_init(next(ki), nhid4, nclass)
    params["ens1"] = _lin_init(next(ki), 4 * nhid4, nhid2)
    params["ens2"] = _lin_init(next(ki), nhid2, nhid3)
    params["ens3"] = _lin_init(next(ki), nhid3, nhid4)
    return params


def pack_params(params, nFeat, nhid2, nhid3, nhid4, nclass):
    """One-time host-side packing into the fused-kernel layout.

    All weights are 128-lane zero-padded and sublane-stacked into ONE [R, 128] slab; all
    biases get one row of ONE [8, 128] slab, so the kernel sees exactly two parameter DMAs.
    torch [out, in] -> [in, out] transposes happen here, once.
    """
    assert (4 * nhid2 <= LANES and 4 * nhid3 <= LANES and 4 * nhid4 <= LANES
            and 5 * nclass <= LANES), "lane-packed layout requires 4*nhid and 5*nclass <= 128"
    nfeat_p = _round_up(nFeat, 8)

    def block_diag(blocks):
        rows = sum(b.shape[0] for b in blocks)
        cols = sum(b.shape[1] for b in blocks)
        out = jnp.zeros((rows, cols), jnp.float32)
        r = c = 0
        for b in blocks:
            out = out.at[r:r + b.shape[0], c:c + b.shape[1]].set(b)
            r += b.shape[0]
            c += b.shape[1]
        return out

    def pad_seg(wmat, rows):
        seg = jnp.zeros((rows, LANES), jnp.float32)
        return seg.at[:wmat.shape[0], :wmat.shape[1]].set(wmat)

    branches = [params["b1"], params["b2"], params["b3"], params["b4"]]

    # Level 1: all branches read the same x -> lane concat of the 4 weights. [nFeat, 4*nhid2]
    w1 = jnp.concatenate([br[0][0] for br in branches], axis=1)
    # Levels 2/3: branch inputs are lane-packed -> block-diagonal weights.
    w2 = block_diag([br[1][0] for br in branches])            # [4*nhid2, 4*nhid3]
    w3 = block_diag([br[2][0] for br in branches])            # [4*nhid3, 4*nhid4]
    # Ensemble MLP weights (transposed once here).
    we1 = params["ens1"][0].T                                 # [4*nhid4, nhid2]
    we2 = params["ens2"][0].T                                 # [nhid2, nhid3]
    we3 = params["ens3"][0].T                                 # [nhid3, nhid4]
    # Heads: dense1..4 block-diagonal on relu(cat), dense5 on the ensemble output.
    dws = [params["dense%d" % i][0].T for i in range(1, 6)]   # each [nhid4, nclass]
    wha = jnp.zeros((4 * nhid4, 5 * nclass), jnp.float32)
    for b in range(4):
        wha = wha.at[b * nhid4:(b + 1) * nhid4, b * nclass:(b + 1) * nclass].set(dws[b])
    whb = jnp.zeros((nhid4, 5 * nclass), jnp.float32).at[:, 4 * nclass:].set(dws[4])

    w_slab = jnp.concatenate([
        pad_seg(w1, nfeat_p),
        pad_seg(w2, LANES), pad_seg(w3, LANES),
        pad_seg(we1, LANES), pad_seg(we2, LANES), pad_seg(we3, LANES),
        pad_seg(wha, LANES), pad_seg(whb, LANES),
    ], axis=0)

    b_rows = [
        jnp.concatenate([br[0][1] for br in branches]),       # row 0: level-1 GCN biases
        jnp.concatenate([br[1][1] for br in branches]),       # row 1: level-2 GCN biases
        jnp.concatenate([br[2][1] for br in branches]),       # row 2: level-3 GCN biases
        params["ens1"][1],                                    # row 3: ensemble1 bias
        params["ens2"][1],                                    # row 4: ensemble2 bias
        params["ens3"][1],                                    # row 5: ensemble3 bias
        jnp.concatenate([params["dense%d" % i][1] for i in range(1, 6)]),  # row 6: head biases
    ]
    b_slab = jnp.zeros((8, LANES), jnp.float32)
    for i, r in enumerate(b_rows):
        b_slab = b_slab.at[i, :r.shape[0]].set(r)

    return {"w": w_slab, "b": b_slab, "nfeat_p": nfeat_p,
            "nhid2": nhid2, "nhid3": nhid3, "nhid4": nhid4, "nclass": nclass}


# --------------------------------------------------------------------------
# Pure-JAX reference (unfused, unpacked) to validate the packed kernel
# --------------------------------------------------------------------------
def reference_forward(params, x, adj1, adj2, adj3, adj4, adj5):
    hp = jax.lax.Precision.HIGHEST

    def gc(h, adj, w, b):
        return jnp.dot(adj, jnp.dot(h, w, precision=hp), precision=hp) + b

    def branch(adj, gcs, dense):
        h = jnp.maximum(gc(x, adj, *gcs[0]), 0.0)
        h = jnp.maximum(gc(h, adj, *gcs[1]), 0.0)
        h = gc(h, adj, *gcs[2])
        d = jnp.dot(jnp.maximum(h, 0.0), dense[0].T, precision=hp) + dense[1]
        return h, d

    x1, d1 = branch(adj5, params["b1"], params["dense1"])
    x2, d2 = branch(adj4, params["b2"], params["dense2"])
    x3, d3 = branch(adj3, params["b3"], params["dense3"])
    x4, d4 = branch(adj1, params["b4"], params["dense4"])
    cat = jnp.concatenate([x1, x2, x3, x4], axis=1)
    e = jnp.maximum(jnp.dot(cat, params["ens1"][0].T, precision=hp) + params["ens1"][1], 0.0)
    e = jnp.maximum(jnp.dot(e, params["ens2"][0].T, precision=hp) + params["ens2"][1], 0.0)
    e = jnp.maximum(jnp.dot(e, params["ens3"][0].T, precision=hp) + params["ens3"][1], 0.0)
    d5 = jnp.dot(e, params["dense5"][0].T, precision=hp) + params["dense5"][1]
    return d1, d2, d3, d4, d5


# --------------------------------------------------------------------------
if __name__ == "__main__":
    # Small shapes consistent with the module.
    N = 8          # graph nodes
    nFeat = 32
    nhid1 = 16     # unused by the module's forward (kept for signature parity)
    nhid2 = 16
    nhid3 = 16
    nhid4 = 16
    nclass = 4

    key = jax.random.PRNGKey(0)
    kp, kx, ka = jax.random.split(key, 3)

    params = init_params(kp, nFeat, nhid2, nhid3, nhid4, nclass)
    packed = pack_params(params, nFeat, nhid2, nhid3, nhid4, nclass)

    x = jax.random.normal(kx, (N, nFeat), jnp.float32)

    # 5 symmetric row-normalized adjacency-like matrices.
    adj_keys = jax.random.split(ka, 5)
    adjs = []
    for k in adj_keys:
        a = jax.random.uniform(k, (N, N), jnp.float32)
        a = (a + a.T) * 0.5 + jnp.eye(N, dtype=jnp.float32)
        a = a / jnp.sum(a, axis=1, keepdims=True)
        adjs.append(a)
    adj1, adj2, adj3, adj4, adj5 = adjs

    outs = gcn_decay_rep1_forward(packed, x, adj1, adj2, adj3, adj4, adj5)
    outs = jax.block_until_ready(outs)

    refs = reference_forward(params, x, adj1, adj2, adj3, adj4, adj5)

    for o, r in zip(outs, refs):
        assert o.shape == (N, nclass), o.shape
        assert jnp.all(jnp.isfinite(o))
        assert jnp.allclose(o, r, rtol=2e-3, atol=2e-3), float(jnp.max(jnp.abs(o - r)))

    print("KERNEL_OK")
</pallas_src>

<mosaic_0001>
module attributes {stable_mosaic.version = 11 : i64} {
  func.func @_fused_forward_kernel(%arg0: memref<8x32xf32, #tpu.memory_space<vmem>>, %arg1: memref<8x32xf32, #tpu.memory_space<vmem>>, %arg2: memref<928x128xf32, #tpu.memory_space<vmem>>, %arg3: memref<8x128xf32, #tpu.memory_space<vmem>>, %arg4: memref<8x128xf32, #tpu.memory_space<vmem>>) attributes {dimension_semantics = [], scalar_prefetch = 0 : i64, scratch_operands = 0 : i64, tpu.core_type = #tpu.core_type<tc>} {
    %c0 = arith.constant 0 : index
    %c0_0 = arith.constant 0 : index
    %0 = vector.load %arg0[%c0, %c0_0] : memref<8x32xf32, #tpu.memory_space<vmem>>, vector<8x32xf32>
    %c0_1 = arith.constant 0 : index
    %c0_2 = arith.constant 0 : index
    %1 = vector.load %arg1[%c0_1, %c0_2] : memref<8x32xf32, #tpu.memory_space<vmem>>, vector<8x32xf32>
    %2 = tpu.iota {dimensions = array<i32: 1>} : vector<8x128xi32>
    %c0_3 = arith.constant 0 : index
    %c0_4 = arith.constant 0 : index
    %3 = vector.load %arg2[%c0_3, %c0_4] : memref<928x128xf32, #tpu.memory_space<vmem>>, vector<32x128xf32>
    %cst = arith.constant dense<0.000000e+00> : vector<8x128xf32>
    %4 = tpu.matmul %0, %3, %cst {dimension_numbers = #tpu.dot_dimension_numbers<[1], [0], [0], [1], [0, 0, 1, 1], [], []>} : vector<8x32xf32>, vector<32x128xf32>, vector<8x128xf32> -> vector<8x128xf32>
    %c0_i32 = arith.constant 0 : i32
    %5 = vector.broadcast %c0_i32 : i32 to vector<8x128xi32>
    %6 = arith.cmpi sge, %2, %5 : vector<8x128xi32>
    %c16_i32 = arith.constant 16 : i32
    %7 = vector.broadcast %c16_i32 : i32 to vector<8x128xi32>
    %8 = arith.cmpi slt, %2, %7 : vector<8x128xi32>
    %9 = arith.andi %6, %8 : vector<8x128xi1>
    %10 = arith.extui %9 : vector<8x128xi1> to vector<8x128xi32>
    %11 = arith.sitofp %10 : vector<8x128xi32> to vector<8x128xf32>
    %c16_i32_5 = arith.constant 16 : i32
    %12 = vector.broadcast %c16_i32_5 : i32 to vector<8x128xi32>
    %13 = arith.cmpi sge, %2, %12 : vector<8x128xi32>
    %c32_i32 = arith.constant 32 : i32
    %14 = vector.broadcast %c32_i32 : i32 to vector<8x128xi32>
    %15 = arith.cmpi slt, %2, %14 : vector<8x128xi32>
    %16 = arith.andi %13, %15 : vector<8x128xi1>
    %17 = arith.extui %16 : vector<8x128xi1> to vector<8x128xi32>
    %18 = arith.sitofp %17 : vector<8x128xi32> to vector<8x128xf32>
    %c32_i32_6 = arith.constant 32 : i32
    %19 = vector.broadcast %c32_i32_6 : i32 to vector<8x128xi32>
    %20 = arith.cmpi sge, %2, %19 : vector<8x128xi32>
    %c48_i32 = arith.constant 48 : i32
    %21 = vector.broadcast %c48_i32 : i32 to vector<8x128xi32>
    %22 = arith.cmpi slt, %2, %21 : vector<8x128xi32>
    %23 = arith.andi %20, %22 : vector<8x128xi1>
    %24 = arith.extui %23 : vector<8x128xi1> to vector<8x128xi32>
    %25 = arith.sitofp %24 : vector<8x128xi32> to vector<8x128xf32>
    %c48_i32_7 = arith.constant 48 : i32
    %26 = vector.broadcast %c48_i32_7 : i32 to vector<8x128xi32>
    %27 = arith.cmpi sge, %2, %26 : vector<8x128xi32>
    %c64_i32 = arith.constant 64 : i32
    %28 = vector.broadcast %c64_i32 : i32 to vector<8x128xi32>
    %29 = arith.cmpi slt, %2, %28 : vector<8x128xi32>
    %30 = arith.andi %27, %29 : vector<8x128xi1>
    %31 = arith.extui %30 : vector<8x128xi1> to vector<8x128xi32>
    %32 = arith.sitofp %31 : vector<8x128xi32> to vector<8x128xf32>
    %33 = arith.mulf %4, %11 : vector<8x128xf32>
    %34 = arith.mulf %4, %18 : vector<8x128xf32>
    %35 = arith.mulf %4, %25 : vector<8x128xf32>
    %36 = arith.mulf %4, %32 : vector<8x128xf32>
    %37 = tpu.concatenate %33, %34, %35, %36 in 0 : vector<8x128xf32>, vector<8x128xf32>, vector<8x128xf32>, vector<8x128xf32> -> vector<32x128xf32>
    %cst_8 = arith.constant dense<0.000000e+00> : vector<8x128xf32>
    %38 = tpu.matmul %1, %37, %cst_8 {dimension_numbers = #tpu.dot_dimension_numbers<[1], [0], [0], [1], [0, 0, 1, 1], [], []>} : vector<8x32xf32>, vector<32x128xf32>, vector<8x128xf32> -> vector<8x128xf32>
    %c0_9 = arith.constant 0 : index
    %c0_10 = arith.constant 0 : index
    %39 = vector.load %arg3[%c0_9, %c0_10] : memref<8x128xf32, #tpu.memory_space<vmem>>, vector<1x128xf32>
    %40 = vector.broadcast %39 : vector<1x128xf32> to vector<8x128xf32>
    %41 = arith.addf %38, %40 : vector<8x128xf32>
    %cst_11 = arith.constant 0.000000e+00 : f32
    %42 = vector.broadcast %cst_11 : f32 to vector<8x128xf32>
    %43 = arith.maximumf %41, %42 : vector<8x128xf32>
    %c32 = arith.constant 32 : index
    %c0_12 = arith.constant 0 : index
    %44 = vector.load %arg2[%c32, %c0_12] : memref<928x128xf32, #tpu.memory_space<vmem>>, vector<128x128xf32>
    %cst_13 = arith.constant dense<0.000000e+00> : vector<8x128xf32>
    %45 = tpu.matmul %43, %44, %cst_13 {dimension_numbers = #tpu.dot_dimension_numbers<[1], [0], [0], [1], [0, 0, 1, 1], [], []>} : vector<8x128xf32>, vector<128x128xf32>, vector<8x128xf32> -> vector<8x128xf32>
    %46 = arith.mulf %45, %11 : vector<8x128xf32>
    %47 = arith.mulf %45, %18 : vector<8x128xf32>
    %48 = arith.mulf %45, %25 : vector<8x128xf32>
    %49 = arith.mulf %45, %32 : vector<8x128xf32>
    %50 = tpu.concatenate %46, %47, %48, %49 in 0 : vector<8x128xf32>, vector<8x128xf32>, vector<8x128xf32>, vector<8x128xf32> -> vector<32x128xf32>
    %cst_14 = arith.constant dense<0.000000e+00> : vector<8x128xf32>
    %51 = tpu.matmul %1, %50, %cst_14 {dimension_numbers = #tpu.dot_dimension_numbers<[1], [0], [0], [1], [0, 0, 1, 1], [], []>} : vector<8x32xf32>, vector<32x128xf32>, vector<8x128xf32> -> vector<8x128xf32>
    %c1 = arith.constant 1 : index
    %c0_15 = arith.constant 0 : index
    %52 = vector.load %arg3[%c1, %c0_15] : memref<8x128xf32, #tpu.memory_space<vmem>>, vector<1x128xf32>
    %53 = vector.broadcast %52 : vector<1x128xf32> to vector<8x128xf32>
    %54 = arith.addf %51, %53 : vector<8x128xf32>
    %cst_16 = arith.constant 0.000000e+00 : f32
    %55 = vector.broadcast %cst_16 : f32 to vector<8x128xf32>
    %56 = arith.maximumf %54, %55 : vector<8x128xf32>
    %c160 = arith.constant 160 : index
    %c0_17 = arith.constant 0 : index
    %57 = vector.load %arg2[%c160, %c0_17] : memref<928x128xf32, #tpu.memory_space<vmem>>, vector<128x128xf32>
    %cst_18 = arith.constant dense<0.000000e+00> : vector<8x128xf32>
    %58 = tpu.matmul %56, %57, %cst_18 {dimension_numbers = #tpu.dot_dimension_numbers<[1], [0], [0], [1], [0, 0, 1, 1], [], []>} : vector<8x128xf32>, vector<128x128xf32>, vector<8x128xf32> -> vector<8x128xf32>
    %59 = arith.mulf %58, %11 : vector<8x128xf32>
    %60 = arith.mulf %58, %18 : vector<8x128xf32>
    %61 = arith.mulf %58, %25 : vector<8x128xf32>
    %62 = arith.mulf %58, %32 : vector<8x128xf32>
    %63 = tpu.concatenate %59, %60, %61, %62 in 0 : vector<8x128xf32>, vector<8x128xf32>, vector<8x128xf32>, vector<8x128xf32> -> vector<32x128xf32>
    %cst_19 = arith.constant dense<0.000000e+00> : vector<8x128xf32>
    %64 = tpu.matmul %1, %63, %cst_19 {dimension_numbers = #tpu.dot_dimension_numbers<[1], [0], [0], [1], [0, 0, 1, 1], [], []>} : vector<8x32xf32>, vector<32x128xf32>, vector<8x128xf32> -> vector<8x128xf32>
    %c2 = arith.constant 2 : index
    %c0_20 = arith.constant 0 : index
    %65 = vector.load %arg3[%c2, %c0_20] : memref<8x128xf32, #tpu.memory_space<vmem>>, vector<1x128xf32>
    %66 = vector.broadcast %65 : vector<1x128xf32> to vector<8x128xf32>
    %67 = arith.addf %64, %66 : vector<8x128xf32>
    %c288 = arith.constant 288 : index
    %c0_21 = arith.constant 0 : index
    %68 = vector.load %arg2[%c288, %c0_21] : memref<928x128xf32, #tpu.memory_space<vmem>>, vector<128x128xf32>
    %cst_22 = arith.constant dense<0.000000e+00> : vector<8x128xf32>
    %69 = tpu.matmul %67, %68, %cst_22 {dimension_numbers = #tpu.dot_dimension_numbers<[1], [0], [0], [1], [0, 0, 1, 1], [], []>} : vector<8x128xf32>, vector<128x128xf32>, vector<8x128xf32> -> vector<8x128xf32>
    %c3 = arith.constant 3 : index
    %c0_23 = arith.constant 0 : index
    %70 = vector.load %arg3[%c3, %c0_23] : memref<8x128xf32, #tpu.memory_space<vmem>>, vector<1x128xf32>
    %71 = vector.broadcast %70 : vector<1x128xf32> to vector<8x128xf32>
    %72 = arith.addf %69, %71 : vector<8x128xf32>
    %cst_24 = arith.constant 0.000000e+00 : f32
    %73 = vector.broadcast %cst_24 : f32 to vector<8x128xf32>
    %74 = arith.maximumf %72, %73 : vector<8x128xf32>
    %c416 = arith.constant 416 : index
    %c0_25 = arith.constant 0 : index
    %75 = vector.load %arg2[%c416, %c0_25] : memref<928x128xf32, #tpu.memory_space<vmem>>, vector<128x128xf32>
    %cst_26 = arith.constant dense<0.000000e+00> : vector<8x128xf32>
    %76 = tpu.matmul %74, %75, %cst_26 {dimension_numbers = #tpu.dot_dimension_numbers<[1], [0], [0], [1], [0, 0, 1, 1], [], []>} : vector<8x128xf32>, vector<128x128xf32>, vector<8x128xf32> -> vector<8x128xf32>
    %c4 = arith.constant 4 : index
    %c0_27 = arith.constant 0 : index
    %77 = vector.load %arg3[%c4, %c0_27] : memref<8x128xf32, #tpu.memory_space<vmem>>, vector<1x128xf32>
    %78 = vector.broadcast %77 : vector<1x128xf32> to vector<8x128xf32>
    %79 = arith.addf %76, %78 : vector<8x128xf32>
    %cst_28 = arith.constant 0.000000e+00 : f32
    %80 = vector.broadcast %cst_28 : f32 to vector<8x128xf32>
    %81 = arith.maximumf %79, %80 : vector<8x128xf32>
    %c544 = arith.constant 544 : index
    %c0_29 = arith.constant 0 : index
    %82 = vector.load %arg2[%c544, %c0_29] : memref<928x128xf32, #tpu.memory_space<vmem>>, vector<128x128xf32>
    %cst_30 = arith.constant dense<0.000000e+00> : vector<8x128xf32>
    %83 = tpu.matmul %81, %82, %cst_30 {dimension_numbers = #tpu.dot_dimension_numbers<[1], [0], [0], [1], [0, 0, 1, 1], [], []>} : vector<8x128xf32>, vector<128x128xf32>, vector<8x128xf32> -> vector<8x128xf32>
    %c5 = arith.constant 5 : index
    %c0_31 = arith.constant 0 : index
    %84 = vector.load %arg3[%c5, %c0_31] : memref<8x128xf32, #tpu.memory_space<vmem>>, vector<1x128xf32>
    %85 = vector.broadcast %84 : vector<1x128xf32> to vector<8x128xf32>
    %86 = arith.addf %83, %85 : vector<8x128xf32>
    %cst_32 = arith.constant 0.000000e+00 : f32
    %87 = vector.broadcast %cst_32 : f32 to vector<8x128xf32>
    %88 = arith.maximumf %86, %87 : vector<8x128xf32>
    %cst_33 = arith.constant 0.000000e+00 : f32
    %89 = vector.broadcast %cst_33 : f32 to vector<8x128xf32>
    %90 = arith.maximumf %67, %89 : vector<8x128xf32>
    %c672 = arith.constant 672 : index
    %c0_34 = arith.constant 0 : index
    %91 = vector.load %arg2[%c672, %c0_34] : memref<928x128xf32, #tpu.memory_space<vmem>>, vector<128x128xf32>
    %cst_35 = arith.constant dense<0.000000e+00> : vector<8x128xf32>
    %92 = tpu.matmul %90, %91, %cst_35 {dimension_numbers = #tpu.dot_dimension_numbers<[1], [0], [0], [1], [0, 0, 1, 1], [], []>} : vector<8x128xf32>, vector<128x128xf32>, vector<8x128xf32> -> vector<8x128xf32>
    %c800 = arith.constant 800 : index
    %c0_36 = arith.constant 0 : index
    %93 = vector.load %arg2[%c800, %c0_36] : memref<928x128xf32, #tpu.memory_space<vmem>>, vector<128x128xf32>
    %cst_37 = arith.constant dense<0.000000e+00> : vector<8x128xf32>
    %94 = tpu.matmul %88, %93, %cst_37 {dimension_numbers = #tpu.dot_dimension_numbers<[1], [0], [0], [1], [0, 0, 1, 1], [], []>} : vector<8x128xf32>, vector<128x128xf32>, vector<8x128xf32> -> vector<8x128xf32>
    %95 = arith.addf %92, %94 : vector<8x128xf32>
    %c6 = arith.constant 6 : index
    %c0_38 = arith.constant 0 : index
    %96 = vector.load %arg3[%c6, %c0_38] : memref<8x128xf32, #tpu.memory_space<vmem>>, vector<1x128xf32>
    %97 = vector.broadcast %96 : vector<1x128xf32> to vector<8x128xf32>
    %98 = arith.addf %95, %97 : vector<8x128xf32>
    %c0_39 = arith.constant 0 : index
    %c0_40 = arith.constant 0 : index
    %99 = vector.load %arg4[%c0_39, %c0_40] : memref<8x128xf32, #tpu.memory_space<vmem>>, vector<8x128xf32>
    tpu.vector_store %arg4[%c0_39, %c0_40], %98 {strides = array<i32>} : memref<8x128xf32, #tpu.memory_space<vmem>>, vector<8x128xf32>,
    return
  }
}

</mosaic_0001>

<llo_original>
// kernel: tpu_custom_call.1
$region0: #{tpu_custom_call.1}
  #allocation0 [shape = 'u32[]', space=smem, size = 0x4, offset = 0x4, fixed_abs, tag = 'smem constant byte address 0x4 - core index']
  #allocation1 [shape = 'u32[144,128]{1,0:T(1,128)}', space=vmem, size = 0x12000, scoped, tag = 'internal scratch']
  %s0 = inlined_call_operand.hbm [shape: f32[8,32], index: 0, kind: input, shape index: {}]
  %s1 = inlined_call_operand.hbm [shape: f32[8,32], index: 1, kind: input, shape index: {}]
  %s2 = inlined_call_operand.hbm [shape: f32[928,128], index: 2, kind: input, shape index: {}]
  %s3 = inlined_call_operand.vmem [shape: f32[8,128], index: 3, kind: input, shape index: {}]
  %s4 = inlined_call_operand.hbm [shape: f32[8,128], index: 4, kind: output, shape index: {}]
  %s5 = sld [smem:[#allocation0]]
  $region38: #{tpu_custom_call.1} parent=0
    _
  %s7 = ssub.s32 1, %s5
  %s8 = scalar_select 0, %s7, %s5
  $region1: #{tpu_custom_call.1} parent=0
    #allocation2 [shape = 'u8[4096]{0}', space=vmem, size = 0x1000, scoped, tag = 'input window, operand 0, single buffered']
    #allocation3 [shape = 's32[1]{0}', space=sflag, size = 0x4, scoped, tag = 'scoped memory for tpu_custom_call.1']
    #allocation4 [shape = 's32[1]{0}', space=sflag, size = 0x4, scoped, tag = 'scoped memory for tpu_custom_call.1']
    #allocation5 [shape = 'u8[4096]{0}', space=vmem, size = 0x1000, scoped, tag = 'input window, operand 1, single buffered']
    #allocation6 [shape = 's32[1]{0}', space=sflag, size = 0x4, scoped, tag = 'scoped memory for tpu_custom_call.1']
    #allocation7 [shape = 'u8[475136]{0}', space=vmem, size = 0x74000, scoped, tag = 'input window, operand 2, single buffered']
    #allocation8 [shape = 'u8[4096]{0}', space=vmem, size = 0x1000, scoped, tag = 'output window, operand 0, single buffered']
    %9 = vsyncpa [#allocation3], 0
    %10 = vsyncpa [#allocation6], 0
    %11 = vsyncpa [#allocation4], 0
    // Predicated region
    $region2: #{tpu_custom_call.1} parent=1 // pred_check
      _
    $region3: #{tpu_custom_call.1} parent=1 // pred_check_branch
      %13 = sbr.rel (0) target = $region5
    $region4: #{tpu_custom_call.1} parent=1 // pred_region
      %s15 = ssub.s32 128, 128
      %16 = vsyncadd [#allocation3], %s15
      %s18 = sshll.u32 [#allocation2], 4
      %s19 = int_to_ptr.vmem [resolvable:$true] %s18
      %21 = dma.hbm_to_vmem [thread:$0]  %s0, 128, %s19, [#allocation3]
    $region5: #{tpu_custom_call.1} parent=1 // pred_fallthru
      _
    // Predicated region
    $region6: #{tpu_custom_call.1} parent=1 // pred_check
      _
    $region7: #{tpu_custom_call.1} parent=1 // pred_check_branch
      %23 = sbr.rel (0) target = $region9
    $region8: #{tpu_custom_call.1} parent=1 // pred_region
      %s25 = ssub.s32 128, 128
      %26 = vsyncadd [#allocation6], %s25
      %s28 = sshll.u32 [#allocation5], 4
      %s29 = int_to_ptr.vmem [resolvable:$true] %s28
      %31 = dma.hbm_to_vmem [thread:$0]  %s1, 128, %s29, [#allocation6]
    $region9: #{tpu_custom_call.1} parent=1 // pred_fallthru
      _
    // Predicated region
    $region10: #{tpu_custom_call.1} parent=1 // pred_check
      _
    $region11: #{tpu_custom_call.1} parent=1 // pred_check_branch
      %33 = sbr.rel (0) target = $region13
    $region12: #{tpu_custom_call.1} parent=1 // pred_region
      %s35 = ssub.s32 14848, 14848
      %36 = vsyncadd [#allocation6], %s35
      %s37 = sshll.u32 [#allocation7], 4
      %s38 = int_to_ptr.vmem [resolvable:$true] %s37
      %43 = dma.hbm_to_vmem [thread:$0]  %s2, 14848, %s38, [#allocation6], 128, 128, 8
    $region13: #{tpu_custom_call.1} parent=1 // pred_fallthru
      _
    // Predicated region
    $region14: #{tpu_custom_call.1} parent=1 // pred_check
      _
    $region15: #{tpu_custom_call.1} parent=1 // pred_check_branch
      %45 = sbr.rel (0) target = $region17
    $region16: #{tpu_custom_call.1} parent=1 // pred_region
      _
    $region17: #{tpu_custom_call.1} parent=1 // pred_fallthru
      _
    // Predicated region
    $region18: #{tpu_custom_call.1} parent=1 // pred_check
      _
    $region19: #{tpu_custom_call.1} parent=1 // pred_check_branch
      %47 = sbr.rel (0) target = $region21
    $region20: #{tpu_custom_call.1} parent=1 // pred_region
      %48 = dma.done [#allocation3], 128
    $region21: #{tpu_custom_call.1} parent=1 // pred_fallthru
      _
    // Predicated region
    $region22: #{tpu_custom_call.1} parent=1 // pred_check
      _
    $region23: #{tpu_custom_call.1} parent=1 // pred_check_branch
      %50 = sbr.rel (0) target = $region25
    $region24: #{tpu_custom_call.1} parent=1 // pred_region
      %51 = dma.done [#allocation6], 128
    $region25: #{tpu_custom_call.1} parent=1 // pred_fallthru
      _
    // Predicated region
    $region26: #{tpu_custom_call.1} parent=1 // pred_check
      _
    $region27: #{tpu_custom_call.1} parent=1 // pred_check_branch
      %53 = sbr.rel (0) target = $region29
    $region28: #{tpu_custom_call.1} parent=1 // pred_region
      %54 = dma.done [#allocation6], 14848
    $region29: #{tpu_custom_call.1} parent=1 // pred_fallthru
      _
    %v55 = vld [vmem:[#allocation2] sm:$0xff]
    %v56 = vld [vmem:[#allocation5] sm:$0xff]
    %v57 = vlaneseq
    %v58 = vand.u32 %v57, 127
    %v59 = vld [vmem:[#allocation7] sm:$0xff]
    %v60 = vld [vmem:[#allocation7 + $0x8] sm:$0xff]
    %v61 = vld [vmem:[#allocation7 + $0x10] sm:$0xff]
    %v62 = vld [vmem:[#allocation7 + $0x18] sm:$0xff]
    %vm63 = vcmask 261120
    %v65 = vsel %vm63, %v55, 0
    %67 = vmatprep.subr.mxu0 0.0
    %68 = vmatpush1.msra.mxu0 %v59
    %69 = vmatprep.subr.mxu0 0.0
    %70 = vmatpush1.msra.mxu0 %v60
    %71 = vmatprep.subr.mxu0 0.0
    %72 = vmatpush1.msra.mxu0 %v61
    %73 = vmatprep.subr.mxu0 0.0
    %74 = vmatpush1.msra.mxu0 %v62
    %75 = vmatprep.subr.mxu0 0.0
    %76 = vmatpush1.msra.mxu0 0.0
    %77 = vmatprep.subr.mxu0 0.0
    %78 = vmatpush1.msra.mxu0 0.0
    %79 = vmatprep.subr.mxu0 0.0
    %80 = vmatpush1.msra.mxu0 0.0
    %81 = vmatprep.subr.mxu0 0.0
    %82 = vmatpush1.msra.mxu0 0.0
    %83 = vmatprep.subr.mxu0 0.0
    %84 = vmatpush1.msra.mxu0 0.0
    %85 = vmatprep.subr.mxu0 0.0
    %86 = vmatpush1.msra.mxu0 0.0
    %87 = vmatprep.subr.mxu0 0.0
    %88 = vmatpush1.msra.mxu0 0.0
    %89 = vmatprep.subr.mxu0 0.0
    %90 = vmatpush1.msra.mxu0 0.0
    %91 = vmatprep.subr.mxu0 0.0
    %92 = vmatpush1.msra.mxu0 0.0
    %93 = vmatprep.subr.mxu0 0.0
    %94 = vmatpush1.msra.mxu0 0.0
    %95 = vmatprep.subr.mxu0 0.0
    %96 = vmatpush1.msra.mxu0 0.0
    %97 = vmatprep.subr.mxu0 0.0
    %98 = vmatpush1.msra.mxu0 0.0
    %99 = vmatprep.subr.mxu0 0.0
    %100 = vmatpush1.msra.mxu0 0.0
    %101 = vmatprep.subr.mxu0 0.0
    %102 = vmatpush1.msra.mxu0 0.0
    %103 = vmatprep.subr.mxu0 0.0
    %104 = vmatpush1.msra.mxu0 0.0
    %105 = vmatprep.subr.mxu0 0.0
    %106 = vmatpush1.msra.mxu0 0.0
    %107 = vmatprep.subr.mxu0 0.0
    %108 = vmatpush1.msra.mxu0 0.0
    %109 = vmatprep.subr.mxu0 0.0
    %110 = vmatpush1.msra.mxu0 0.0
    %111 = vmatprep.subr.mxu0 0.0
    %112 = vmatpush1.msra.mxu0 0.0
    %113 = vmatprep.subr.mxu0 0.0
    %114 = vmatpush1.msra.mxu0 0.0
    %115 = vmatprep.subr.mxu0 0.0
    %116 = vmatpush1.msra.mxu0 0.0
    %117 = vmatprep.subr.mxu0 0.0
    %118 = vmatpush1.msra.mxu0 0.0
    %119 = vmatprep.subr.mxu0 0.0
    %120 = vmatpush1.msra.mxu0 0.0
    %121 = vmatprep.subr.mxu0 0.0
    %122 = vmatpush1.msra.mxu0 0.0
    %123 = vmatprep.subr.mxu0 0.0
    %124 = vmatpush1.msra.mxu0 0.0
    %125 = vmatprep.subr.mxu0 0.0
    %126 = vmatpush1.msra.mxu0 0.0
    %127 = vmatprep.subr.mxu0 0.0
    %128 = vmatpush1.msra.mxu0 0.0
    %129 = vmatprep.subr.mxu0 0.0
    %130 = vmatpush1.msra.mxu0 0.0
    %131 = vmatprep.mubr.f32.mxu0 0.0
    %132 = vmatmul.mubr.f32.gmra.mrb[0].mxu0 %v65
    %v133 = vpop.f32.mrb[0].mxu0
    %v134 = vadd.f32 0.0, %v133
    %v135 = vpop.f32.mrb[0].mxu0
    %136 = vdwg.mxu0
    %vm137 = vcmp.ge.s32.totalorder %v58, 0
    %vm138 = vcmp.lt.s32.totalorder %v58, 16
    %vm139 = vmand %vm137, %vm138
    %v140 = vsel %vm139, 1, 0
    %v141 = vcvt.s32.f32 %v140
    %vm142 = vcmp.ge.s32.totalorder %v58, 16
    %vm143 = vcmp.lt.s32.totalorder %v58, 32
    %vm144 = vmand %vm142, %vm143
    %v145 = vsel %vm144, 1, 0
    %v146 = vcvt.s32.f32 %v145
    %vm147 = vcmp.ge.s32.totalorder %v58, 32
    %vm148 = vcmp.lt.s32.totalorder %v58, 48
    %vm149 = vmand %vm147, %vm148
    %v150 = vsel %vm149, 1, 0
    %v151 = vcvt.s32.f32 %v150
    %vm152 = vcmp.ge.s32.totalorder %v58, 48
    %vm153 = vcmp.lt.s32.totalorder %v58, 64
    %vm154 = vmand %vm152, %vm153
    %v155 = vsel %vm154, 1, 0
    %v156 = vcvt.s32.f32 %v155
    %v157 = vmul.f32 %v134, %v141
    %v158 = vmul.f32 %v134, %v146
    %v159 = vmul.f32 %v134, %v151
    %v160 = vmul.f32 %v134, %v156
    %v161 = vld [vmem:[%s3] sm:$0x1]
    %v162 = vlaneseq
    %v163 = vshrl.u32 %v162, 7
    %v164 = vsub.s32 0, %v163
    %v165 = vrot.slane %v161, %v164
    %v167 = vsel %vm63, %v56, 0
    %169 = vmatprep.subr.mxu0 0.0
    %170 = vmatpush1.msra.mxu0 %v157
    %171 = vmatprep.subr.mxu0 0.0
    %172 = vmatpush1.msra.mxu0 %v158
    %173 = vmatprep.subr.mxu0 0.0
    %174 = vmatpush1.msra.mxu0 %v159
    %175 = vmatprep.subr.mxu0 0.0
    %176 = vmatpush1.msra.mxu0 %v160
    %177 = vmatprep.subr.mxu0 0.0
    %178 = vmatpush1.msra.mxu0 0.0
    %179 = vmatprep.subr.mxu0 0.0
    %180 = vmatpush1.msra.mxu0 0.0
    %181 = vmatprep.subr.mxu0 0.0
    %182 = vmatpush1.msra.mxu0 0.0
    %183 = vmatprep.subr.mxu0 0.0
    %184 = vmatpush1.msra.mxu0 0.0
    %185 = vmatprep.subr.mxu0 0.0
    %186 = vmatpush1.msra.mxu0 0.0
    %187 = vmatprep.subr.mxu0 0.0
    %188 = vmatpush1.msra.mxu0 0.0
    %189 = vmatprep.subr.mxu0 0.0
    %190 = vmatpush1.msra.mxu0 0.0
    %191 = vmatprep.subr.mxu0 0.0
    %192 = vmatpush1.msra.mxu0 0.0
    %193 = vmatprep.subr.mxu0 0.0
    %194 = vmatpush1.msra.mxu0 0.0
    %195 = vmatprep.subr.mxu0 0.0
    %196 = vmatpush1.msra.mxu0 0.0
    %197 = vmatprep.subr.mxu0 0.0
    %198 = vmatpush1.msra.mxu0 0.0
    %199 = vmatprep.subr.mxu0 0.0
    %200 = vmatpush1.msra.mxu0 0.0
    %201 = vmatprep.subr.mxu0 0.0
    %202 = vmatpush1.msra.mxu0 0.0
    %203 = vmatprep.subr.mxu0 0.0
    %204 = vmatpush1.msra.mxu0 0.0
    %205 = vmatprep.subr.mxu0 0.0
    %206 = vmatpush1.msra.mxu0 0.0
    %207 = vmatprep.subr.mxu0 0.0
    %208 = vmatpush1.msra.mxu0 0.0
    %209 = vmatprep.subr.mxu0 0.0
    %210 = vmatpush1.msra.mxu0 0.0
    %211 = vmatprep.subr.mxu0 0.0
    %212 = vmatpush1.msra.mxu0 0.0
    %213 = vmatprep.subr.mxu0 0.0
    %214 = vmatpush1.msra.mxu0 0.0
    %215 = vmatprep.subr.mxu0 0.0
    %216 = vmatpush1.msra.mxu0 0.0
    %217 = vmatprep.subr.mxu0 0.0
    %218 = vmatpush1.msra.mxu0 0.0
    %219 = vmatprep.subr.mxu0 0.0
    %220 = vmatpush1.msra.mxu0 0.0
    %221 = vmatprep.subr.mxu0 0.0
    %222 = vmatpush1.msra.mxu0 0.0
    %223 = vmatprep.subr.mxu0 0.0
    %224 = vmatpush1.msra.mxu0 0.0
    %225 = vmatprep.subr.mxu0 0.0
    %226 = vmatpush1.msra.mxu0 0.0
    %227 = vmatprep.subr.mxu0 0.0
    %228 = vmatpush1.msra.mxu0 0.0
    %229 = vmatprep.subr.mxu0 0.0
    %230 = vmatpush1.msra.mxu0 0.0
    %231 = vmatprep.subr.mxu0 0.0
    %232 = vmatpush1.msra.mxu0 0.0
    %233 = vmatprep.mubr.f32.mxu0 0.0
    %234 = vmatmul.mubr.f32.gmra.mrb[0].mxu0 %v167
    %v235 = vpop.f32.mrb[0].mxu0
    %v236 = vadd.f32 %v165, %v235
    %v237 = vpop.f32.mrb[0].mxu0
    %238 = vdwg.mxu0
    %v239 = vmax.f32 %v236, 0.0
    %v240 = vld [vmem:[#allocation7 + $0x20] sm:$0xff]
    %v241 = vld [vmem:[#allocation7 + $0x28] sm:$0xff]
    %v242 = vld [vmem:[#allocation7 + $0x30] sm:$0xff]
    %v243 = vld [vmem:[#allocation7 + $0x38] sm:$0xff]
    %v244 = vld [vmem:[#allocation7 + $0x40] sm:$0xff]
    %v245 = vld [vmem:[#allocation7 + $0x48] sm:$0xff]
    %v246 = vld [vmem:[#allocation7 + $0x50] sm:$0xff]
    %v247 = vld [vmem:[#allocation7 + $0x58] sm:$0xff]
    %v248 = vld [vmem:[#allocation7 + $0x60] sm:$0xff]
    %v249 = vld [vmem:[#allocation7 + $0x68] sm:$0xff]
    %v250 = vld [vmem:[#allocation7 + $0x70] sm:$0xff]
    %v251 = vld [vmem:[#allocation7 + $0x78] sm:$0xff]
    %v252 = vld [vmem:[#allocation7 + $0x80] sm:$0xff]
    %v253 = vld [vmem:[#allocation7 + $0x88] sm:$0xff]
    %v254 = vld [vmem:[#allocation7 + $0x90] sm:$0xff]
    %v255 = vld [vmem:[#allocation7 + $0x98] sm:$0xff]
    %256 = vmatprep.subr.mxu0 0.0
    %257 = vmatpush1.msra.mxu0 %v240
    %258 = vmatprep.subr.mxu0 0.0
    %259 = vmatpush1.msra.mxu0 %v241
    %260 = vmatprep.subr.mxu0 0.0
    %261 = vmatpush1.msra.mxu0 %v242
    %262 = vmatprep.subr.mxu0 0.0
    %263 = vmatpush1.msra.mxu0 %v243
    %264 = vmatprep.subr.mxu0 0.0
    %265 = vmatpush1.msra.mxu0 %v244
    %266 = vmatprep.subr.mxu0 0.0
    %267 = vmatpush1.msra.mxu0 %v245
    %268 = vmatprep.subr.mxu0 0.0
    %269 = vmatpush1.msra.mxu0 %v246
    %270 = vmatprep.subr.mxu0 0.0
    %271 = vmatpush1.msra.mxu0 %v247
    %272 = vmatprep.subr.mxu0 0.0
    %273 = vmatpush1.msra.mxu0 %v248
    %274 = vmatprep.subr.mxu0 0.0
    %275 = vmatpush1.msra.mxu0 %v249
    %276 = vmatprep.subr.mxu0 0.0
    %277 = vmatpush1.msra.mxu0 %v250
    %278 = vmatprep.subr.mxu0 0.0
    %279 = vmatpush1.msra.mxu0 %v251
    %280 = vmatprep.subr.mxu0 0.0
    %281 = vmatpush1.msra.mxu0 %v252
    %282 = vmatprep.subr.mxu0 0.0
    %283 = vmatpush1.msra.mxu0 %v253
    %284 = vmatprep.subr.mxu0 0.0
    %285 = vmatpush1.msra.mxu0 %v254
    %286 = vmatprep.subr.mxu0 0.0
    %287 = vmatpush1.msra.mxu0 %v255
    %288 = vmatprep.subr.mxu0 0.0
    %289 = vmatpush1.msra.mxu0 0.0
    %290 = vmatprep.subr.mxu0 0.0
    %291 = vmatpush1.msra.mxu0 0.0
    %292 = vmatprep.subr.mxu0 0.0
    %293 = vmatpush1.msra.mxu0 0.0
    %294 = vmatprep.subr.mxu0 0.0
    %295 = vmatpush1.msra.mxu0 0.0
    %296 = vmatprep.subr.mxu0 0.0
    %297 = vmatpush1.msra.mxu0 0.0
    %298 = vmatprep.subr.mxu0 0.0
    %299 = vmatpush1.msra.mxu0 0.0
    %300 = vmatprep.subr.mxu0 0.0
    %301 = vmatpush1.msra.mxu0 0.0
    %302 = vmatprep.subr.mxu0 0.0
    %303 = vmatpush1.msra.mxu0 0.0
    %304 = vmatprep.subr.mxu0 0.0
    %305 = vmatpush1.msra.mxu0 0.0
    %306 = vmatprep.subr.mxu0 0.0
    %307 = vmatpush1.msra.mxu0 0.0
    %308 = vmatprep.subr.mxu0 0.0
    %309 = vmatpush1.msra.mxu0 0.0
    %310 = vmatprep.subr.mxu0 0.0
    %311 = vmatpush1.msra.mxu0 0.0
    %312 = vmatprep.subr.mxu0 0.0
    %313 = vmatpush1.msra.mxu0 0.0
    %314 = vmatprep.subr.mxu0 0.0
    %315 = vmatpush1.msra.mxu0 0.0
    %316 = vmatprep.subr.mxu0 0.0
    %317 = vmatpush1.msra.mxu0 0.0
    %318 = vmatprep.subr.mxu0 0.0
    %319 = vmatpush1.msra.mxu0 0.0
    %320 = vmatprep.mubr.f32.mxu0 0.0
    %321 = vmatmul.mubr.f32.gmra.mrb[0].mxu0 %v239
    %v322 = vpop.f32.mrb[0].mxu0
    %v323 = vadd.f32 0.0, %v322
    %v324 = vpop.f32.mrb[0].mxu0
    %325 = vdwg.mxu0
    %v326 = vmul.f32 %v323, %v141
    %v327 = vmul.f32 %v323, %v146
    %v328 = vmul.f32 %v323, %v151
    %v329 = vmul.f32 %v323, %v156
    %v330 = vld [vmem:[%s3 + $0x1] sm:$0x1]
    %v331 = vlaneseq
    %v332 = vshrl.u32 %v331, 7
    %v333 = vsub.s32 0, %v332
    %v334 = vrot.slane %v330, %v333
    %335 = vmatprep.subr.mxu0 0.0
    %336 = vmatpush1.msra.mxu0 %v326
    %337 = vmatprep.subr.mxu0 0.0
    %338 = vmatpush1.msra.mxu0 %v327
    %339 = vmatprep.subr.mxu0 0.0
    %340 = vmatpush1.msra.mxu0 %v328
    %341 = vmatprep.subr.mxu0 0.0
    %342 = vmatpush1.msra.mxu0 %v329
    %343 = vmatprep.subr.mxu0 0.0
    %344 = vmatpush1.msra.mxu0 0.0
    %345 = vmatprep.subr.mxu0 0.0
    %346 = vmatpush1.msra.mxu0 0.0
    %347 = vmatprep.subr.mxu0 0.0
    %348 = vmatpush1.msra.mxu0 0.0
    %349 = vmatprep.subr.mxu0 0.0
    %350 = vmatpush1.msra.mxu0 0.0
    %351 = vmatprep.subr.mxu0 0.0
    %352 = vmatpush1.msra.mxu0 0.0
    %353 = vmatprep.subr.mxu0 0.0
    %354 = vmatpush1.msra.mxu0 0.0
    %355 = vmatprep.subr.mxu0 0.0
    %356 = vmatpush1.msra.mxu0 0.0
    %357 = vmatprep.subr.mxu0 0.0
    %358 = vmatpush1.msra.mxu0 0.0
    %359 = vmatprep.subr.mxu0 0.0
    %360 = vmatpush1.msra.mxu0 0.0
    %361 = vmatprep.subr.mxu0 0.0
    %362 = vmatpush1.msra.mxu0 0.0
    %363 = vmatprep.subr.mxu0 0.0
    %364 = vmatpush1.msra.mxu0 0.0
    %365 = vmatprep.subr.mxu0 0.0
    %366 = vmatpush1.msra.mxu0 0.0
    %367 = vmatprep.subr.mxu0 0.0
    %368 = vmatpush1.msra.mxu0 0.0
    %369 = vmatprep.subr.mxu0 0.0
    %370 = vmatpush1.msra.mxu0 0.0
    %371 = vmatprep.subr.mxu0 0.0
    %372 = vmatpush1.msra.mxu0 0.0
    %373 = vmatprep.subr.mxu0 0.0
    %374 = vmatpush1.msra.mxu0 0.0
    %375 = vmatprep.subr.mxu0 0.0
    %376 = vmatpush1.msra.mxu0 0.0
    %377 = vmatprep.subr.mxu0 0.0
    %378 = vmatpush1.msra.mxu0 0.0
    %379 = vmatprep.subr.mxu0 0.0
    %380 = vmatpush1.msra.mxu0 0.0
    %381 = vmatprep.subr.mxu0 0.0
    %382 = vmatpush1.msra.mxu0 0.0
    %383 = vmatprep.subr.mxu0 0.0
    %384 = vmatpush1.msra.mxu0 0.0
    %385 = vmatprep.subr.mxu0 0.0
    %386 = vmatpush1.msra.mxu0 0.0
    %387 = vmatprep.subr.mxu0 0.0
    %388 = vmatpush1.msra.mxu0 0.0
    %389 = vmatprep.subr.mxu0 0.0
    %390 = vmatpush1.msra.mxu0 0.0
    %391 = vmatprep.subr.mxu0 0.0
    %392 = vmatpush1.msra.mxu0 0.0
    %393 = vmatprep.subr.mxu0 0.0
    %394 = vmatpush1.msra.mxu0 0.0
    %395 = vmatprep.subr.mxu0 0.0
    %396 = vmatpush1.msra.mxu0 0.0
    %397 = vmatprep.subr.mxu0 0.0
    %398 = vmatpush1.msra.mxu0 0.0
    %399 = vmatprep.mubr.f32.mxu0 0.0
    %400 = vmatmul.mubr.f32.gmra.mrb[0].mxu0 %v167
    %v401 = vpop.f32.mrb[0].mxu0
    %v402 = vadd.f32 %v334, %v401
    %v403 = vpop.f32.mrb[0].mxu0
    %404 = vdwg.mxu0
    %v405 = vmax.f32 %v402, 0.0
    %v406 = vld [vmem:[#allocation7 + $0xa0] sm:$0xff]
    %v407 = vld [vmem:[#allocation7 + $0xa8] sm:$0xff]
    %v408 = vld [vmem:[#allocation7 + $0xb0] sm:$0xff]
    %v409 = vld [vmem:[#allocation7 + $0xb8] sm:$0xff]
    %v410 = vld [vmem:[#allocation7 + $0xc0] sm:$0xff]
    %v411 = vld [vmem:[#allocation7 + $0xc8] sm:$0xff]
    %v412 = vld [vmem:[#allocation7 + $0xd0] sm:$0xff]
    %v413 = vld [vmem:[#allocation7 + $0xd8] sm:$0xff]
    %v414 = vld [vmem:[#allocation7 + $0xe0] sm:$0xff]
    %v415 = vld [vmem:[#allocation7 + $0xe8] sm:$0xff]
    %v416 = vld [vmem:[#allocation7 + $0xf0] sm:$0xff]
    %v417 = vld [vmem:[#allocation7 + $0xf8] sm:$0xff]
    %v418 = vld [vmem:[#allocation7 + $0x100] sm:$0xff]
    %v419 = vld [vmem:[#allocation7 + $0x108] sm:$0xff]
    %v420 = vld [vmem:[#allocation7 + $0x110] sm:$0xff]
    %v421 = vld [vmem:[#allocation7 + $0x118] sm:$0xff]
    %422 = vmatprep.subr.mxu0 0.0
    %423 = vmatpush1.msra.mxu0 %v406
    %424 = vmatprep.subr.mxu0 0.0
    %425 = vmatpush1.msra.mxu0 %v407
    %426 = vmatprep.subr.mxu0 0.0
    %427 = vmatpush1.msra.mxu0 %v408
    %428 = vmatprep.subr.mxu0 0.0
    %429 = vmatpush1.msra.mxu0 %v409
    %430 = vmatprep.subr.mxu0 0.0
    %431 = vmatpush1.msra.mxu0 %v410
    %432 = vmatprep.subr.mxu0 0.0
    %433 = vmatpush1.msra.mxu0 %v411
    %434 = vmatprep.subr.mxu0 0.0
    %435 = vmatpush1.msra.mxu0 %v412
    %436 = vmatprep.subr.mxu0 0.0
    %437 = vmatpush1.msra.mxu0 %v413
    %438 = vmatprep.subr.mxu0 0.0
    %439 = vmatpush1.msra.mxu0 %v414
    %440 = vmatprep.subr.mxu0 0.0
    %441 = vmatpush1.msra.mxu0 %v415
    %442 = vmatprep.subr.mxu0 0.0
    %443 = vmatpush1.msra.mxu0 %v416
    %444 = vmatprep.subr.mxu0 0.0
    %445 = vmatpush1.msra.mxu0 %v417
    %446 = vmatprep.subr.mxu0 0.0
    %447 = vmatpush1.msra.mxu0 %v418
    %448 = vmatprep.subr.mxu0 0.0
    %449 = vmatpush1.msra.mxu0 %v419
    %450 = vmatprep.subr.mxu0 0.0
    %451 = vmatpush1.msra.mxu0 %v420
    %452 = vmatprep.subr.mxu0 0.0
    %453 = vmatpush1.msra.mxu0 %v421
    %454 = vmatprep.subr.mxu0 0.0
    %455 = vmatpush1.msra.mxu0 0.0
    %456 = vmatprep.subr.mxu0 0.0
    %457 = vmatpush1.msra.mxu0 0.0
    %458 = vmatprep.subr.mxu0 0.0
    %459 = vmatpush1.msra.mxu0 0.0
    %460 = vmatprep.subr.mxu0 0.0
    %461 = vmatpush1.msra.mxu0 0.0
    %462 = vmatprep.subr.mxu0 0.0
    %463 = vmatpush1.msra.mxu0 0.0
    %464 = vmatprep.subr.mxu0 0.0
    %465 = vmatpush1.msra.mxu0 0.0
    %466 = vmatprep.subr.mxu0 0.0
    %467 = vmatpush1.msra.mxu0 0.0
    %468 = vmatprep.subr.mxu0 0.0
    %469 = vmatpush1.msra.mxu0 0.0
    %470 = vmatprep.subr.mxu0 0.0
    %471 = vmatpush1.msra.mxu0 0.0
    %472 = vmatprep.subr.mxu0 0.0
    %473 = vmatpush1.msra.mxu0 0.0
    %474 = vmatprep.subr.mxu0 0.0
    %475 = vmatpush1.msra.mxu0 0.0
    %476 = vmatprep.subr.mxu0 0.0
    %477 = vmatpush1.msra.mxu0 0.0
    %478 = vmatprep.subr.mxu0 0.0
    %479 = vmatpush1.msra.mxu0 0.0
    %480 = vmatprep.subr.mxu0 0.0
    %481 = vmatpush1.msra.mxu0 0.0
    %482 = vmatprep.subr.mxu0 0.0
    %483 = vmatpush1.msra.mxu0 0.0
    %484 = vmatprep.subr.mxu0 0.0
    %485 = vmatpush1.msra.mxu0 0.0
    %486 = vmatprep.mubr.f32.mxu0 0.0
    %487 = vmatmul.mubr.f32.gmra.mrb[0].mxu0 %v405
    %v488 = vpop.f32.mrb[0].mxu0
    %v489 = vadd.f32 0.0, %v488
    %v490 = vpop.f32.mrb[0].mxu0
    %491 = vdwg.mxu0
    %v492 = vmul.f32 %v489, %v141
    %v493 = vmul.f32 %v489, %v146
    %v494 = vmul.f32 %v489, %v151
    %v495 = vmul.f32 %v489, %v156
    %v496 = vld [vmem:[%s3 + $0x2] sm:$0x1]
    %v497 = vlaneseq
    %v498 = vshrl.u32 %v497, 7
    %v499 = vsub.s32 0, %v498
    %v500 = vrot.slane %v496, %v499
    %501 = vmatprep.subr.mxu0 0.0
    %502 = vmatpush1.msra.mxu0 %v492
    %503 = vmatprep.subr.mxu0 0.0
    %504 = vmatpush1.msra.mxu0 %v493
    %505 = vmatprep.subr.mxu0 0.0
    %506 = vmatpush1.msra.mxu0 %v494
    %507 = vmatprep.subr.mxu0 0.0
    %508 = vmatpush1.msra.mxu0 %v495
    %509 = vmatprep.subr.mxu0 0.0
    %510 = vmatpush1.msra.mxu0 0.0
    %511 = vmatprep.subr.mxu0 0.0
    %512 = vmatpush1.msra.mxu0 0.0
    %513 = vmatprep.subr.mxu0 0.0
    %514 = vmatpush1.msra.mxu0 0.0
    %515 = vmatprep.subr.mxu0 0.0
    %516 = vmatpush1.msra.mxu0 0.0
    %517 = vmatprep.subr.mxu0 0.0
    %518 = vmatpush1.msra.mxu0 0.0
    %519 = vmatprep.subr.mxu0 0.0
    %520 = vmatpush1.msra.mxu0 0.0
    %521 = vmatprep.subr.mxu0 0.0
    %522 = vmatpush1.msra.mxu0 0.0
    %523 = vmatprep.subr.mxu0 0.0
    %524 = vmatpush1.msra.mxu0 0.0
    %525 = vmatprep.subr.mxu0 0.0
    %526 = vmatpush1.msra.mxu0 0.0
    %527 = vmatprep.subr.mxu0 0.0
    %528 = vmatpush1.msra.mxu0 0.0
    %529 = vmatprep.subr.mxu0 0.0
    %530 = vmatpush1.msra.mxu0 0.0
    %531 = vmatprep.subr.mxu0 0.0
    %532 = vmatpush1.msra.mxu0 0.0
    %533 = vmatprep.subr.mxu0 0.0
    %534 = vmatpush1.msra.mxu0 0.0
    %535 = vmatprep.subr.mxu0 0.0
    %536 = vmatpush1.msra.mxu0 0.0
    %537 = vmatprep.subr.mxu0 0.0
    %538 = vmatpush1.msra.mxu0 0.0
    %539 = vmatprep.subr.mxu0 0.0
    %540 = vmatpush1.msra.mxu0 0.0
    %541 = vmatprep.subr.mxu0 0.0
    %542 = vmatpush1.msra.mxu0 0.0
    %543 = vmatprep.subr.mxu0 0.0
    %544 = vmatpush1.msra.mxu0 0.0
    %545 = vmatprep.subr.mxu0 0.0
    %546 = vmatpush1.msra.mxu0 0.0
    %547 = vmatprep.subr.mxu0 0.0
    %548 = vmatpush1.msra.mxu0 0.0
    %549 = vmatprep.subr.mxu0 0.0
    %550 = vmatpush1.msra.mxu0 0.0
    %551 = vmatprep.subr.mxu0 0.0
    %552 = vmatpush1.msra.mxu0 0.0
    %553 = vmatprep.subr.mxu0 0.0
    %554 = vmatpush1.msra.mxu0 0.0
    %555 = vmatprep.subr.mxu0 0.0
    %556 = vmatpush1.msra.mxu0 0.0
    %557 = vmatprep.subr.mxu0 0.0
    %558 = vmatpush1.msra.mxu0 0.0
    %559 = vmatprep.subr.mxu0 0.0
    %560 = vmatpush1.msra.mxu0 0.0
    %561 = vmatprep.subr.mxu0 0.0
    %562 = vmatpush1.msra.mxu0 0.0
    %563 = vmatprep.subr.mxu0 0.0
    %564 = vmatpush1.msra.mxu0 0.0
    %565 = vmatprep.mubr.f32.mxu0 0.0
    %566 = vmatmul.mubr.f32.gmra.mrb[0].mxu0 %v167
    %v567 = vpop.f32.mrb[0].mxu0
    %v568 = vadd.f32 %v500, %v567
    %v569 = vpop.f32.mrb[0].mxu0
    %570 = vdwg.mxu0
    %v571 = vld [vmem:[#allocation7 + $0x120] sm:$0xff]
    %v572 = vld [vmem:[#allocation7 + $0x128] sm:$0xff]
    %v573 = vld [vmem:[#allocation7 + $0x130] sm:$0xff]
    %v574 = vld [vmem:[#allocation7 + $0x138] sm:$0xff]
    %v575 = vld [vmem:[#allocation7 + $0x140] sm:$0xff]
    %v576 = vld [vmem:[#allocation7 + $0x148] sm:$0xff]
    %v577 = vld [vmem:[#allocation7 + $0x150] sm:$0xff]
    %v578 = vld [vmem:[#allocation7 + $0x158] sm:$0xff]
    %v579 = vld [vmem:[#allocation7 + $0x160] sm:$0xff]
    %v580 = vld [vmem:[#allocation7 + $0x168] sm:$0xff]
    %v581 = vld [vmem:[#allocation7 + $0x170] sm:$0xff]
    %v582 = vld [vmem:[#allocation7 + $0x178] sm:$0xff]
    %v583 = vld [vmem:[#allocation7 + $0x180] sm:$0xff]
    %v584 = vld [vmem:[#allocation7 + $0x188] sm:$0xff]
    %v585 = vld [vmem:[#allocation7 + $0x190] sm:$0xff]
    %v586 = vld [vmem:[#allocation7 + $0x198] sm:$0xff]
    %v587 = vld [vmem:[%s3 + $0x3] sm:$0x1]
    %v588 = vlaneseq
    %v589 = vshrl.u32 %v588, 7
    %v590 = vsub.s32 0, %v589
    %v591 = vrot.slane %v587, %v590
    %592 = vmatprep.subr.mxu0 0.0
    %593 = vmatpush1.msra.mxu0 %v571
    %594 = vmatprep.subr.mxu0 0.0
    %595 = vmatpush1.msra.mxu0 %v572
    %596 = vmatprep.subr.mxu0 0.0
    %597 = vmatpush1.msra.mxu0 %v573
    %598 = vmatprep.subr.mxu0 0.0
    %599 = vmatpush1.msra.mxu0 %v574
    %600 = vmatprep.subr.mxu0 0.0
    %601 = vmatpush1.msra.mxu0 %v575
    %602 = vmatprep.subr.mxu0 0.0
    %603 = vmatpush1.msra.mxu0 %v576
    %604 = vmatprep.subr.mxu0 0.0
    %605 = vmatpush1.msra.mxu0 %v577
    %606 = vmatprep.subr.mxu0 0.0
    %607 = vmatpush1.msra.mxu0 %v578
    %608 = vmatprep.subr.mxu0 0.0
    %609 = vmatpush1.msra.mxu0 %v579
    %610 = vmatprep.subr.mxu0 0.0
    %611 = vmatpush1.msra.mxu0 %v580
    %612 = vmatprep.subr.mxu0 0.0
    %613 = vmatpush1.msra.mxu0 %v581
    %614 = vmatprep.subr.mxu0 0.0
    %615 = vmatpush1.msra.mxu0 %v582
    %616 = vmatprep.subr.mxu0 0.0
    %617 = vmatpush1.msra.mxu0 %v583
    %618 = vmatprep.subr.mxu0 0.0
    %619 = vmatpush1.msra.mxu0 %v584
    %620 = vmatprep.subr.mxu0 0.0
    %621 = vmatpush1.msra.mxu0 %v585
    %622 = vmatprep.subr.mxu0 0.0
    %623 = vmatpush1.msra.mxu0 %v586
    %624 = vmatprep.subr.mxu0 0.0
    %625 = vmatpush1.msra.mxu0 0.0
    %626 = vmatprep.subr.mxu0 0.0
    %627 = vmatpush1.msra.mxu0 0.0
    %628 = vmatprep.subr.mxu0 0.0
    %629 = vmatpush1.msra.mxu0 0.0
    %630 = vmatprep.subr.mxu0 0.0
    %631 = vmatpush1.msra.mxu0 0.0
    %632 = vmatprep.subr.mxu0 0.0
    %633 = vmatpush1.msra.mxu0 0.0
    %634 = vmatprep.subr.mxu0 0.0
    %635 = vmatpush1.msra.mxu0 0.0
    %636 = vmatprep.subr.mxu0 0.0
    %637 = vmatpush1.msra.mxu0 0.0
    %638 = vmatprep.subr.mxu0 0.0
    %639 = vmatpush1.msra.mxu0 0.0
    %640 = vmatprep.subr.mxu0 0.0
    %641 = vmatpush1.msra.mxu0 0.0
    %642 = vmatprep.subr.mxu0 0.0
    %643 = vmatpush1.msra.mxu0 0.0
    %644 = vmatprep.subr.mxu0 0.0
    %645 = vmatpush1.msra.mxu0 0.0
    %646 = vmatprep.subr.mxu0 0.0
    %647 = vmatpush1.msra.mxu0 0.0
    %648 = vmatprep.subr.mxu0 0.0
    %649 = vmatpush1.msra.mxu0 0.0
    %650 = vmatprep.subr.mxu0 0.0
    %651 = vmatpush1.msra.mxu0 0.0
    %652 = vmatprep.subr.mxu0 0.0
    %653 = vmatpush1.msra.mxu0 0.0
    %654 = vmatprep.subr.mxu0 0.0
    %655 = vmatpush1.msra.mxu0 0.0
    %656 = vmatprep.mubr.f32.mxu0 0.0
    %657 = vmatmul.mubr.f32.gmra.mrb[0].mxu0 %v568
    %v658 = vpop.f32.mrb[0].mxu0
    %v659 = vadd.f32 %v591, %v658
    %v660 = vpop.f32.mrb[0].mxu0
    %661 = vdwg.mxu0
    %v662 = vmax.f32 %v659, 0.0
    %v663 = vld [vmem:[#allocation7 + $0x1a0] sm:$0xff]
    %v664 = vld [vmem:[#allocation7 + $0x1a8] sm:$0xff]
    %v665 = vld [vmem:[#allocation7 + $0x1b0] sm:$0xff]
    %v666 = vld [vmem:[#allocation7 + $0x1b8] sm:$0xff]
    %v667 = vld [vmem:[#allocation7 + $0x1c0] sm:$0xff]
    %v668 = vld [vmem:[#allocation7 + $0x1c8] sm:$0xff]
    %v669 = vld [vmem:[#allocation7 + $0x1d0] sm:$0xff]
    %v670 = vld [vmem:[#allocation7 + $0x1d8] sm:$0xff]
    %v671 = vld [vmem:[#allocation7 + $0x1e0] sm:$0xff]
    %v672 = vld [vmem:[#allocation7 + $0x1e8] sm:$0xff]
    %v673 = vld [vmem:[#allocation7 + $0x1f0] sm:$0xff]
    %v674 = vld [vmem:[#allocation7 + $0x1f8] sm:$0xff]
    %v675 = vld [vmem:[#allocation7 + $0x200] sm:$0xff]
    %v676 = vld [vmem:[#allocation7 + $0x208] sm:$0xff]
    %v677 = vld [vmem:[#allocation7 + $0x210] sm:$0xff]
    %v678 = vld [vmem:[#allocation7 + $0x218] sm:$0xff]
    %v679 = vld [vmem:[%s3 + $0x4] sm:$0x1]
    %v680 = vlaneseq
    %v681 = vshrl.u32 %v680, 7
    %v682 = vsub.s32 0, %v681
    %v683 = vrot.slane %v679, %v682
    %684 = vmatprep.subr.mxu0 0.0
    %685 = vmatpush1.msra.mxu0 %v663
    %686 = vmatprep.subr.mxu0 0.0
    %687 = vmatpush1.msra.mxu0 %v664
    %688 = vmatprep.subr.mxu0 0.0
    %689 = vmatpush1.msra.mxu0 %v665
    %690 = vmatprep.subr.mxu0 0.0
    %691 = vmatpush1.msra.mxu0 %v666
    %692 = vmatprep.subr.mxu0 0.0
    %693 = vmatpush1.msra.mxu0 %v667
    %694 = vmatprep.subr.mxu0 0.0
    %695 = vmatpush1.msra.mxu0 %v668
    %696 = vmatprep.subr.mxu0 0.0
    %697 = vmatpush1.msra.mxu0 %v669
    %698 = vmatprep.subr.mxu0 0.0
    %699 = vmatpush1.msra.mxu0 %v670
    %700 = vmatprep.subr.mxu0 0.0
    %701 = vmatpush1.msra.mxu0 %v671
    %702 = vmatprep.subr.mxu0 0.0
    %703 = vmatpush1.msra.mxu0 %v672
    %704 = vmatprep.subr.mxu0 0.0
    %705 = vmatpush1.msra.mxu0 %v673
    %706 = vmatprep.subr.mxu0 0.0
    %707 = vmatpush1.msra.mxu0 %v674
    %708 = vmatprep.subr.mxu0 0.0
    %709 = vmatpush1.msra.mxu0 %v675
    %710 = vmatprep.subr.mxu0 0.0
    %711 = vmatpush1.msra.mxu0 %v676
    %712 = vmatprep.subr.mxu0 0.0
    %713 = vmatpush1.msra.mxu0 %v677
    %714 = vmatprep.subr.mxu0 0.0
    %715 = vmatpush1.msra.mxu0 %v678
    %716 = vmatprep.subr.mxu0 0.0
    %717 = vmatpush1.msra.mxu0 0.0
    %718 = vmatprep.subr.mxu0 0.0
    %719 = vmatpush1.msra.mxu0 0.0
    %720 = vmatprep.subr.mxu0 0.0
    %721 = vmatpush1.msra.mxu0 0.0
    %722 = vmatprep.subr.mxu0 0.0
    %723 = vmatpush1.msra.mxu0 0.0
    %724 = vmatprep.subr.mxu0 0.0
    %725 = vmatpush1.msra.mxu0 0.0
    %726 = vmatprep.subr.mxu0 0.0
    %727 = vmatpush1.msra.mxu0 0.0
    %728 = vmatprep.subr.mxu0 0.0
    %729 = vmatpush1.msra.mxu0 0.0
    %730 = vmatprep.subr.mxu0 0.0
    %731 = vmatpush1.msra.mxu0 0.0
    %732 = vmatprep.subr.mxu0 0.0
    %733 = vmatpush1.msra.mxu0 0.0
    %734 = vmatprep.subr.mxu0 0.0
    %735 = vmatpush1.msra.mxu0 0.0
    %736 = vmatprep.subr.mxu0 0.0
    %737 = vmatpush1.msra.mxu0 0.0
    %738 = vmatprep.subr.mxu0 0.0
    %739 = vmatpush1.msra.mxu0 0.0
    %740 = vmatprep.subr.mxu0 0.0
    %741 = vmatpush1.msra.mxu0 0.0
    %742 = vmatprep.subr.mxu0 0.0
    %743 = vmatpush1.msra.mxu0 0.0
    %744 = vmatprep.subr.mxu0 0.0
    %745 = vmatpush1.msra.mxu0 0.0
    %746 = vmatprep.subr.mxu0 0.0
    %747 = vmatpush1.msra.mxu0 0.0
    %748 = vmatprep.mubr.f32.mxu0 0.0
    %749 = vmatmul.mubr.f32.gmra.mrb[0].mxu0 %v662
    %v750 = vpop.f32.mrb[0].mxu0
    %v751 = vadd.f32 %v683, %v750
    %v752 = vpop.f32.mrb[0].mxu0
    %753 = vdwg.mxu0
    %v754 = vmax.f32 %v751, 0.0
    %v755 = vld [vmem:[#allocation7 + $0x220] sm:$0xff]
    %v756 = vld [vmem:[#allocation7 + $0x228] sm:$0xff]
    %v757 = vld [vmem:[#allocation7 + $0x230] sm:$0xff]
    %v758 = vld [vmem:[#allocation7 + $0x238] sm:$0xff]
    %v759 = vld [vmem:[#allocation7 + $0x240] sm:$0xff]
    %v760 = vld [vmem:[#allocation7 + $0x248] sm:$0xff]
    %v761 = vld [vmem:[#allocation7 + $0x250] sm:$0xff]
    %v762 = vld [vmem:[#allocation7 + $0x258] sm:$0xff]
    %v763 = vld [vmem:[#allocation7 + $0x260] sm:$0xff]
    %v764 = vld [vmem:[#allocation7 + $0x268] sm:$0xff]
    %v765 = vld [vmem:[#allocation7 + $0x270] sm:$0xff]
    %v766 = vld [vmem:[#allocation7 + $0x278] sm:$0xff]
    %v767 = vld [vmem:[#allocation7 + $0x280] sm:$0xff]
    %v768 = vld [vmem:[#allocation7 + $0x288] sm:$0xff]
    %v769 = vld [vmem:[#allocation7 + $0x290] sm:$0xff]
    %v770 = vld [vmem:[#allocation7 + $0x298] sm:$0xff]
    %v771 = vld [vmem:[%s3 + $0x5] sm:$0x1]
    %v772 = vlaneseq
    %v773 = vshrl.u32 %v772, 7
    %v774 = vsub.s32 0, %v773
    %v775 = vrot.slane %v771, %v774
    %776 = vmatprep.subr.mxu0 0.0
    %777 = vmatpush1.msra.mxu0 %v755
    %778 = vmatprep.subr.mxu0 0.0
    %779 = vmatpush1.msra.mxu0 %v756
    %780 = vmatprep.subr.mxu0 0.0
    %781 = vmatpush1.msra.mxu0 %v757
    %782 = vmatprep.subr.mxu0 0.0
    %783 = vmatpush1.msra.mxu0 %v758
    %784 = vmatprep.subr.mxu0 0.0
    %785 = vmatpush1.msra.mxu0 %v759
    %786 = vmatprep.subr.mxu0 0.0
    %787 = vmatpush1.msra.mxu0 %v760
    %788 = vmatprep.subr.mxu0 0.0
    %789 = vmatpush1.msra.mxu0 %v761
    %790 = vmatprep.subr.mxu0 0.0
    %791 = vmatpush1.msra.mxu0 %v762
    %792 = vmatprep.subr.mxu0 0.0
    %793 = vmatpush1.msra.mxu0 %v763
    %794 = vmatprep.subr.mxu0 0.0
    %795 = vmatpush1.msra.mxu0 %v764
    %796 = vmatprep.subr.mxu0 0.0
    %797 = vmatpush1.msra.mxu0 %v765
    %798 = vmatprep.subr.mxu0 0.0
    %799 = vmatpush1.msra.mxu0 %v766
    %800 = vmatprep.subr.mxu0 0.0
    %801 = vmatpush1.msra.mxu0 %v767
    %802 = vmatprep.subr.mxu0 0.0
    %803 = vmatpush1.msra.mxu0 %v768
    %804 = vmatprep.subr.mxu0 0.0
    %805 = vmatpush1.msra.mxu0 %v769
    %806 = vmatprep.subr.mxu0 0.0
    %807 = vmatpush1.msra.mxu0 %v770
    %808 = vmatprep.subr.mxu0 0.0
    %809 = vmatpush1.msra.mxu0 0.0
    %810 = vmatprep.subr.mxu0 0.0
    %811 = vmatpush1.msra.mxu0 0.0
    %812 = vmatprep.subr.mxu0 0.0
    %813 = vmatpush1.msra.mxu0 0.0
    %814 = vmatprep.subr.mxu0 0.0
    %815 = vmatpush1.msra.mxu0 0.0
    %816 = vmatprep.subr.mxu0 0.0
    %817 = vmatpush1.msra.mxu0 0.0
    %818 = vmatprep.subr.mxu0 0.0
    %819 = vmatpush1.msra.mxu0 0.0
    %820 = vmatprep.subr.mxu0 0.0
    %821 = vmatpush1.msra.mxu0 0.0
    %822 = vmatprep.subr.mxu0 0.0
    %823 = vmatpush1.msra.mxu0 0.0
    %824 = vmatprep.subr.mxu0 0.0
    %825 = vmatpush1.msra.mxu0 0.0
    %826 = vmatprep.subr.mxu0 0.0
    %827 = vmatpush1.msra.mxu0 0.0
    %828 = vmatprep.subr.mxu0 0.0
    %829 = vmatpush1.msra.mxu0 0.0
    %830 = vmatprep.subr.mxu0 0.0
    %831 = vmatpush1.msra.mxu0 0.0
    %832 = vmatprep.subr.mxu0 0.0
    %833 = vmatpush1.msra.mxu0 0.0
    %834 = vmatprep.subr.mxu0 0.0
    %835 = vmatpush1.msra.mxu0 0.0
    %836 = vmatprep.subr.mxu0 0.0
    %837 = vmatpush1.msra.mxu0 0.0
    %838 = vmatprep.subr.mxu0 0.0
    %839 = vmatpush1.msra.mxu0 0.0
    %840 = vmatprep.mubr.f32.mxu0 0.0
    %841 = vmatmul.mubr.f32.gmra.mrb[0].mxu0 %v754
    %v842 = vpop.f32.mrb[0].mxu0
    %v843 = vadd.f32 %v775, %v842
    %v844 = vpop.f32.mrb[0].mxu0
    %845 = vdwg.mxu0
    %v846 = vmax.f32 %v843, 0.0
    %v847 = vmax.f32 %v568, 0.0
    %v848 = vld [vmem:[#allocation7 + $0x2a0] sm:$0xff]
    %v849 = vld [vmem:[#allocation7 + $0x2a8] sm:$0xff]
    %v850 = vld [vmem:[#allocation7 + $0x2b0] sm:$0xff]
    %v851 = vld [vmem:[#allocation7 + $0x2b8] sm:$0xff]
    %v852 = vld [vmem:[#allocation7 + $0x2c0] sm:$0xff]
    %v853 = vld [vmem:[#allocation7 + $0x2c8] sm:$0xff]
    %v854 = vld [vmem:[#allocation7 + $0x2d0] sm:$0xff]
    %v855 = vld [vmem:[#allocation7 + $0x2d8] sm:$0xff]
    %v856 = vld [vmem:[#allocation7 + $0x2e0] sm:$0xff]
    %v857 = vld [vmem:[#allocation7 + $0x2e8] sm:$0xff]
    %v858 = vld [vmem:[#allocation7 + $0x2f0] sm:$0xff]
    %v859 = vld [vmem:[#allocation7 + $0x2f8] sm:$0xff]
    %v860 = vld [vmem:[#allocation7 + $0x300] sm:$0xff]
    %v861 = vld [vmem:[#allocation7 + $0x308] sm:$0xff]
    %v862 = vld [vmem:[#allocation7 + $0x310] sm:$0xff]
    %v863 = vld [vmem:[#allocation7 + $0x318] sm:$0xff]
    %v864 = vld [vmem:[#allocation7 + $0x320] sm:$0xff]
    %v865 = vld [vmem:[#allocation7 + $0x328] sm:$0xff]
    %v866 = vld [vmem:[#allocation7 + $0x330] sm:$0xff]
    %v867 = vld [vmem:[#allocation7 + $0x338] sm:$0xff]
    %v868 = vld [vmem:[#allocation7 + $0x340] sm:$0xff]
    %v869 = vld [vmem:[#allocation7 + $0x348] sm:$0xff]
    %v870 = vld [vmem:[#allocation7 + $0x350] sm:$0xff]
    %v871 = vld [vmem:[#allocation7 + $0x358] sm:$0xff]
    %v872 = vld [vmem:[#allocation7 + $0x360] sm:$0xff]
    %v873 = vld [vmem:[#allocation7 + $0x368] sm:$0xff]
    %v874 = vld [vmem:[#allocation7 + $0x370] sm:$0xff]
    %v875 = vld [vmem:[#allocation7 + $0x378] sm:$0xff]
    %v876 = vld [vmem:[#allocation7 + $0x380] sm:$0xff]
    %v877 = vld [vmem:[#allocation7 + $0x388] sm:$0xff]
    %v878 = vld [vmem:[#allocation7 + $0x390] sm:$0xff]
    %v879 = vld [vmem:[#allocation7 + $0x398] sm:$0xff]
    %880 = vmatprep.subr.mxu0 0.0
    %881 = vmatpush1.msra.mxu0 %v864
    %882 = vmatprep.subr.mxu0 0.0
    %883 = vmatpush1.msra.mxu0 %v865
    %884 = vmatprep.subr.mxu0 0.0
    %885 = vmatpush1.msra.mxu0 %v866
    %886 = vmatprep.subr.mxu0 0.0
    %887 = vmatpush1.msra.mxu0 %v867
    %888 = vmatprep.subr.mxu0 0.0
    %889 = vmatpush1.msra.mxu0 %v868
    %890 = vmatprep.subr.mxu0 0.0
    %891 = vmatpush1.msra.mxu0 %v869
    %892 = vmatprep.subr.mxu0 0.0
    %893 = vmatpush1.msra.mxu0 %v870
    %894 = vmatprep.subr.mxu0 0.0
    %895 = vmatpush1.msra.mxu0 %v871
    %896 = vmatprep.subr.mxu0 0.0
    %897 = vmatpush1.msra.mxu0 %v872
    %898 = vmatprep.subr.mxu0 0.0
    %899 = vmatpush1.msra.mxu0 %v873
    %900 = vmatprep.subr.mxu0 0.0
    %901 = vmatpush1.msra.mxu0 %v874
    %902 = vmatprep.subr.mxu0 0.0
    %903 = vmatpush1.msra.mxu0 %v875
    %904 = vmatprep.subr.mxu0 0.0
    %905 = vmatpush1.msra.mxu0 %v876
    %906 = vmatprep.subr.mxu0 0.0
    %907 = vmatpush1.msra.mxu0 %v877
    %908 = vmatprep.subr.mxu0 0.0
    %909 = vmatpush1.msra.mxu0 %v878
    %910 = vmatprep.subr.mxu0 0.0
    %911 = vmatpush1.msra.mxu0 %v879
    %912 = vmatprep.subr.mxu0 0.0
    %913 = vmatpush1.msra.mxu0 0.0
    %914 = vmatprep.subr.mxu0 0.0
    %915 = vmatpush1.msra.mxu0 0.0
    %916 = vmatprep.subr.mxu0 0.0
    %917 = vmatpush1.msra.mxu0 0.0
    %918 = vmatprep.subr.mxu0 0.0
    %919 = vmatpush1.msra.mxu0 0.0
    %920 = vmatprep.subr.mxu0 0.0
    %921 = vmatpush1.msra.mxu0 0.0
    %922 = vmatprep.subr.mxu0 0.0
    %923 = vmatpush1.msra.mxu0 0.0
    %924 = vmatprep.subr.mxu0 0.0
    %925 = vmatpush1.msra.mxu0 0.0
    %926 = vmatprep.subr.mxu0 0.0
    %927 = vmatpush1.msra.mxu0 0.0
    %928 = vmatprep.subr.mxu0 0.0
    %929 = vmatpush1.msra.mxu0 0.0
    %930 = vmatprep.subr.mxu0 0.0
    %931 = vmatpush1.msra.mxu0 0.0
    %932 = vmatprep.subr.mxu0 0.0
    %933 = vmatpush1.msra.mxu0 0.0
    %934 = vmatprep.subr.mxu0 0.0
    %935 = vmatpush1.msra.mxu0 0.0
    %936 = vmatprep.subr.mxu0 0.0
    %937 = vmatpush1.msra.mxu0 0.0
    %938 = vmatprep.subr.mxu0 0.0
    %939 = vmatpush1.msra.mxu0 0.0
    %940 = vmatprep.subr.mxu0 0.0
    %941 = vmatpush1.msra.mxu0 0.0
    %942 = vmatprep.subr.mxu0 0.0
    %943 = vmatpush1.msra.mxu0 0.0
    %944 = vmatprep.mubr.f32.mxu0 0.0
    %945 = vmatmul.mubr.f32.gmra.mrb[0].mxu0 %v846
    %v946 = vpop.f32.mrb[0].mxu0
    %v947 = vadd.f32 0.0, %v946
    %v948 = vpop.f32.mrb[0].mxu0
    %949 = vdwg.mxu0
    %950 = vmatprep.subr.mxu0 0.0
    %951 = vmatpush1.msra.mxu0 %v848
    %952 = vmatprep.subr.mxu0 0.0
    %953 = vmatpush1.msra.mxu0 %v849
    %954 = vmatprep.subr.mxu0 0.0
    %955 = vmatpush1.msra.mxu0 %v850
    %956 = vmatprep.subr.mxu0 0.0
    %957 = vmatpush1.msra.mxu0 %v851
    %958 = vmatprep.subr.mxu0 0.0
    %959 = vmatpush1.msra.mxu0 %v852
    %960 = vmatprep.subr.mxu0 0.0
    %961 = vmatpush1.msra.mxu0 %v853
    %962 = vmatprep.subr.mxu0 0.0
    %963 = vmatpush1.msra.mxu0 %v854
    %964 = vmatprep.subr.mxu0 0.0
    %965 = vmatpush1.msra.mxu0 %v855
    %966 = vmatprep.subr.mxu0 0.0
    %967 = vmatpush1.msra.mxu0 %v856
    %968 = vmatprep.subr.mxu0 0.0
    %969 = vmatpush1.msra.mxu0 %v857
    %970 = vmatprep.subr.mxu0 0.0
    %971 = vmatpush1.msra.mxu0 %v858
    %972 = vmatprep.subr.mxu0 0.0
    %973 = vmatpush1.msra.mxu0 %v859
    %974 = vmatprep.subr.mxu0 0.0
    %975 = vmatpush1.msra.mxu0 %v860
    %976 = vmatprep.subr.mxu0 0.0
    %977 = vmatpush1.msra.mxu0 %v861
    %978 = vmatprep.subr.mxu0 0.0
    %979 = vmatpush1.msra.mxu0 %v862
    %980 = vmatprep.subr.mxu0 0.0
    %981 = vmatpush1.msra.mxu0 %v863
    %982 = vmatprep.subr.mxu0 0.0
    %983 = vmatpush1.msra.mxu0 0.0
    %984 = vmatprep.subr.mxu0 0.0
    %985 = vmatpush1.msra.mxu0 0.0
    %986 = vmatprep.subr.mxu0 0.0
    %987 = vmatpush1.msra.mxu0 0.0
    %988 = vmatprep.subr.mxu0 0.0
    %989 = vmatpush1.msra.mxu0 0.0
    %990 = vmatprep.subr.mxu0 0.0
    %991 = vmatpush1.msra.mxu0 0.0
    %992 = vmatprep.subr.mxu0 0.0
    %993 = vmatpush1.msra.mxu0 0.0
    %994 = vmatprep.subr.mxu0 0.0
    %995 = vmatpush1.msra.mxu0 0.0
    %996 = vmatprep.subr.mxu0 0.0
    %997 = vmatpush1.msra.mxu0 0.0
    %998 = vmatprep.subr.mxu0 0.0
    %999 = vmatpush1.msra.mxu0 0.0
    %1000 = vmatprep.subr.mxu0 0.0
    %1001 = vmatpush1.msra.mxu0 0.0
    %1002 = vmatprep.subr.mxu0 0.0
    %1003 = vmatpush1.msra.mxu0 0.0
    %1004 = vmatprep.subr.mxu0 0.0
    %1005 = vmatpush1.msra.mxu0 0.0
    %1006 = vmatprep.subr.mxu0 0.0
    %1007 = vmatpush1.msra.mxu0 0.0
    %1008 = vmatprep.subr.mxu0 0.0
    %1009 = vmatpush1.msra.mxu0 0.0
    %1010 = vmatprep.subr.mxu0 0.0
    %1011 = vmatpush1.msra.mxu0 0.0
    %1012 = vmatprep.subr.mxu0 0.0
    %1013 = vmatpush1.msra.mxu0 0.0
    %1014 = vmatprep.mubr.f32.mxu0 0.0
    %1015 = vmatmul.mubr.f32.gmra.mrb[0].mxu0 %v847
    %v1016 = vpop.f32.mrb[0].mxu0
    %v1017 = vadd.f32 %v947, %v1016
    %v1018 = vpop.f32.mrb[0].mxu0
    %1019 = vdwg.mxu0
    %v1020 = vld [vmem:[%s3 + $0x6] sm:$0x1]
    %v1021 = vlaneseq
    %v1022 = vshrl.u32 %v1021, 7
    %v1023 = vsub.s32 0, %v1022
    %v1024 = vrot.slane %v1020, %v1023
    %v1025 = vadd.f32 %v1017, %v1024
    %1026 = vst [vmem:[#allocation8] sm:$0xff] %v1025
    // Predicated region
    $region30: #{tpu_custom_call.1} parent=1 // pred_check
      _
    $region31: #{tpu_custom_call.1} parent=1 // pred_check_branch
      %1028 = sbr.rel (0) target = $region33
    $region32: #{tpu_custom_call.1} parent=1 // pred_region
      %s1030 = ssub.s32 128, 128
      %1031 = vsyncadd [#allocation4], %s1030
      %s1033 = sshll.u32 [#allocation8], 4
      %s1034 = int_to_ptr.vmem [resolvable:$true] %s1033
      %1036 = dma.vmem_to_hbm [thread:$0]  %s1034, 128, %s4, [#allocation4]
    $region33: #{tpu_custom_call.1} parent=1 // pred_fallthru
      _
    // Predicated region
    $region34: #{tpu_custom_call.1} parent=1 // pred_check
      _
    $region35: #{tpu_custom_call.1} parent=1 // pred_check_branch
      %1038 = sbr.rel (0) target = $region37
    $region36: #{tpu_custom_call.1} parent=1 // pred_region
      %1039 = dma.done [#allocation4], 128
    $region37: #{tpu_custom_call.1} parent=1 // pred_fallthru
      _
    %1040 = vsyncpa [#allocation3], 1
    %1041 = vsyncpa [#allocation6], 1
    %1042 = vsyncpa [#allocation4], 1

</llo_original>
